<compile_context>
chip_gen: v5e
topology: v5e:2x2
jax: 0.10.0
libtpu: 0.0.40
codegen_flags: <defaults>
</compile_context>

<pallas_src>
import jax
import jax.numpy as jnp
from jax.experimental import pallas as pl
from jax.experimental.pallas import tpu as pltpu


def model_rnn_kernel(x_ref, w_in_ref, b_in_ref, w_rnn_ref, b_rnn_ref,
                     w_out_ref, b_out_ref, o_ref):
    mm_dtype = w_in_ref.dtype  # bf16 or f32 matmul operands; accumulation is f32.

    # Input linear + ReLU (MXU matmul, f32 accumulate; bias/ReLU in f32 on the VPU).
    x = x_ref[...].astype(mm_dtype)  # no-op if x already matches mm_dtype
    h = jnp.dot(x, w_in_ref[...], preferred_element_type=jnp.float32)
    h = jnp.maximum(h + b_in_ref[...], 0.0)

    # Stacked RNN layers, seq_len == 1, h0 == 0  =>  h = tanh(h @ W_ih^T + b_ih + b_hh).
    # Static unroll: rnn_layers is tiny. (Switch to lax.fori_loop if it grows large.)
    num_layers = w_rnn_ref.shape[0]
    for l in range(num_layers):
        z = jnp.dot(h.astype(mm_dtype), w_rnn_ref[l],
                    preferred_element_type=jnp.float32)
        h = jnp.tanh(z + b_rnn_ref[l])

    # Output linear; store directly into the unpadded (tm, out_size) block.
    y = jnp.dot(h.astype(mm_dtype), w_out_ref[...],
                preferred_element_type=jnp.float32)
    o_ref[...] = (y + b_out_ref[...]).astype(o_ref.dtype)


def _round_up(a, m):
    return ((a + m - 1) // m) * m


def model_rnn_forward(x, params, *, use_bf16=True, tm=4096):
    """x: (N, input_size) -> (N, output_size) float32."""
    w_in, b_in, w_rnn, b_rnn, w_out, b_out = params
    n, in_size = x.shape
    num_layers, hidden, _ = w_rnn.shape
    out_size = w_out.shape[1]

    # ---- Matmul-operand dtype (f32 accumulation either way). Weights are tiny,
    # cast them once here; x is cast (if needed) inside the kernel. ----
    mm_dtype = jnp.bfloat16 if use_bf16 else jnp.float32
    w_in_c = w_in.astype(mm_dtype)
    w_rnn_c = w_rnn.astype(mm_dtype)
    w_out_c = w_out.astype(mm_dtype)

    # ---- Batch tiling. tm must be a multiple of 8 (sublane constraint); cap the
    # tile so there are >= 2 grid steps for moderate N (v7x megacore sharding). ----
    tm = max(8, _round_up(tm, 8))
    tm_eff = min(tm, max(8, _round_up(pl.cdiv(n, 2), 8)))
    grid = (pl.cdiv(n, tm_eff),)

    # ---- Scheduler hints. ----
    flops = 2 * n * (in_size * hidden
                     + num_layers * hidden * hidden
                     + hidden * out_size)
    transcendentals = num_layers * n * hidden
    weight_bytes = (w_in_c.size * w_in_c.dtype.itemsize
                    + w_rnn_c.size * w_rnn_c.dtype.itemsize
                    + w_out_c.size * w_out_c.dtype.itemsize
                    + (b_in.size + b_rnn.size + b_out.size) * 4)
    bytes_accessed = (x.size * x.dtype.itemsize
                      + weight_bytes
                      + n * out_size * 4)

    # ---- VMEM budget: double-buffered x/out blocks + weights + activation scratch,
    # with 2x headroom, clamped well below any generation's physical VMEM. ----
    x_blk = tm_eff * in_size * x.dtype.itemsize
    o_blk = tm_eff * out_size * 4
    act_scratch = 4 * tm_eff * hidden * 4  # a few live f32 activation tiles
    vmem_limit = int(min(max(2 * (2 * (x_blk + o_blk) + 2 * weight_bytes
                                  + act_scratch),
                             4 * 1024 * 1024),
                         32 * 1024 * 1024))

    out = pl.pallas_call(
        model_rnn_kernel,
        out_shape=jax.ShapeDtypeStruct((n, out_size), jnp.float32),
        grid=grid,
        in_specs=[
            # x: tiled along batch (double-buffered by the pipeline; ragged last
            # block is clamped by Pallas — OOB rows only affect discarded rows).
            pl.BlockSpec((tm_eff, in_size), lambda i: (i, 0)),
            # Weights / biases: full-array blocks, constant index_map ->
            # DMA'd once, VMEM-resident across all grid steps.
            pl.BlockSpec((in_size, hidden), lambda i: (0, 0)),
            pl.BlockSpec((1, hidden), lambda i: (0, 0)),
            pl.BlockSpec((num_layers, hidden, hidden), lambda i: (0, 0, 0)),
            pl.BlockSpec((num_layers, 1, hidden), lambda i: (0, 0, 0)),
            pl.BlockSpec((hidden, out_size), lambda i: (0, 0)),
            pl.BlockSpec((1, out_size), lambda i: (0, 0)),
        ],
        out_specs=pl.BlockSpec((tm_eff, out_size), lambda i: (i, 0)),
        compiler_params=pltpu.CompilerParams(
            dimension_semantics=("parallel",),     # shard batch tiles over TCs (v7x)
            vmem_limit_bytes=vmem_limit,
        ),
        cost_estimate=pl.CostEstimate(
            flops=flops,
            transcendentals=transcendentals,
            bytes_accessed=bytes_accessed,
        ),
    )(x, w_in_c, b_in, w_rnn_c, b_rnn, w_out_c, b_out)

    return out


def init_params(key, input_size, hidden_size, output_size, rnn_layers):
    """Deterministic init mimicking PyTorch's U(-1/sqrt(fan_in), 1/sqrt(fan_in)).

    Weights are stored pre-transposed to (in_features, out_features) so every
    matmul in the kernel is a plain `h @ W` on the MXU; the two RNN biases are
    folded (valid because seq_len == 1 and h0 == 0)."""
    ks = jax.random.split(key, 8)

    def uni(k, shape, fan_in):
        bound = 1.0 / jnp.sqrt(fan_in)
        return jax.random.uniform(k, shape, jnp.float32, -bound, bound)

    w_in = uni(ks[0], (input_size, hidden_size), input_size)
    b_in = uni(ks[1], (1, hidden_size), input_size)

    w_rnn = uni(ks[2], (rnn_layers, hidden_size, hidden_size), hidden_size)
    b_ih = uni(ks[3], (rnn_layers, 1, hidden_size), hidden_size)
    b_hh = uni(ks[4], (rnn_layers, 1, hidden_size), hidden_size)
    b_rnn = b_ih + b_hh

    w_out = uni(ks[5], (hidden_size, output_size), hidden_size)
    b_out = uni(ks[6], (1, output_size), hidden_size)

    return (w_in, b_in, w_rnn, b_rnn, w_out, b_out)


def reference_forward(x, params):
    w_in, b_in, w_rnn, b_rnn, w_out, b_out = params
    h = jnp.maximum(x @ w_in + b_in, 0.0)
    for l in range(w_rnn.shape[0]):
        h = jnp.tanh(h @ w_rnn[l] + b_rnn[l])
    return h @ w_out + b_out


if __name__ == "__main__":
    # Small shapes consistent with the module's forward.
    input_size = 16      # ini.get('linear_input_size')
    hidden_size = 32     # ini.get('hidden_size')
    output_size = 4      # ini.get('output_size')
    rnn_layers = 2       # ini.get('rnn_layers')

    key = jax.random.PRNGKey(0)
    k_x1, k_x2, k_p = jax.random.split(key, 3)
    params = init_params(k_p, input_size, hidden_size, output_size, rnn_layers)

    # 1) Tiny batch, f32 operands: exact-ish match vs reference (single grid tile).
    x1 = jax.random.normal(k_x1, (8, input_size), dtype=jnp.float32)
    out1 = jax.block_until_ready(model_rnn_forward(x1, params, use_bf16=False))
    ref1 = reference_forward(x1, params)
    assert out1.shape == (8, output_size)
    assert jnp.allclose(out1, ref1, atol=1e-5, rtol=1e-5)

    # 2) Non-divisible batch with multiple grid tiles (exercises the ragged last
    #    block + masked output writeback: 200 = 3*64 + 8).
    x2 = jax.random.normal(k_x2, (200, input_size), dtype=jnp.float32)
    out2 = jax.block_until_ready(model_rnn_forward(x2, params, use_bf16=False, tm=64))
    ref2 = reference_forward(x2, params)
    assert out2.shape == (200, output_size)
    assert jnp.allclose(out2, ref2, atol=1e-5, rtol=1e-5)

    # 3) Default bf16 matmul operands (x cast in-kernel, f32 accumulation /
    #    activations) — looser tolerance since x itself is quantized to bf16.
    out3 = jax.block_until_ready(model_rnn_forward(x2, params, tm=64))
    assert out3.shape == (200, output_size)
    assert jnp.allclose(out3, ref2, atol=5e-2, rtol=5e-2)

    # 4) Large default tile path (tm=4096) on a bigger batch, still >= 2 tiles.
    x3 = jax.random.normal(k_x1, (1000, input_size), dtype=jnp.float32)
    out4 = jax.block_until_ready(model_rnn_forward(x3, params, use_bf16=False))
    ref4 = reference_forward(x3, params)
    assert out4.shape == (1000, output_size)
    assert jnp.allclose(out4, ref4, atol=1e-5, rtol=1e-5)

    print("KERNEL_OK")
</pallas_src>

<mosaic_0001>
module attributes {stable_mosaic.version = 11 : i64} {
  func.func @model_rnn_kernel(%arg0: i32, %arg1: memref<8x16xf32, #tpu.memory_space<vmem>>, %arg2: memref<16x32xf32, #tpu.memory_space<vmem>>, %arg3: memref<1x32xf32, #tpu.memory_space<vmem>>, %arg4: memref<2x32x32xf32, #tpu.memory_space<vmem>>, %arg5: memref<2x1x32xf32, #tpu.memory_space<vmem>>, %arg6: memref<32x4xf32, #tpu.memory_space<vmem>>, %arg7: memref<1x4xf32, #tpu.memory_space<vmem>>, %arg8: memref<8x4xf32, #tpu.memory_space<vmem>>) attributes {dimension_semantics = [#tpu.dimension_semantics<parallel>], iteration_bounds = array<i64: 1>, scalar_prefetch = 0 : i64, scratch_operands = 0 : i64, tpu.core_type = #tpu.core_type<tc>, window_params = [{transform_indices = @transform_0, window_bounds = array<i64: 8, 16>}, {pipeline_mode = #tpu.pipeline_mode<synchronous>, transform_indices = @transform_1, window_bounds = array<i64: 16, 32>}, {pipeline_mode = #tpu.pipeline_mode<synchronous>, transform_indices = @transform_2, window_bounds = array<i64: 1, 32>}, {pipeline_mode = #tpu.pipeline_mode<synchronous>, transform_indices = @transform_3, window_bounds = array<i64: 2, 32, 32>}, {pipeline_mode = #tpu.pipeline_mode<synchronous>, transform_indices = @transform_4, window_bounds = array<i64: 2, 1, 32>}, {pipeline_mode = #tpu.pipeline_mode<synchronous>, transform_indices = @transform_5, window_bounds = array<i64: 32, 4>}, {pipeline_mode = #tpu.pipeline_mode<synchronous>, transform_indices = @transform_6, window_bounds = array<i64: 1, 4>}, {transform_indices = @transform_7, window_bounds = array<i64: 8, 4>}]} {
    %c0 = arith.constant 0 : index
    %c0_0 = arith.constant 0 : index
    %0 = vector.load %arg1[%c0, %c0_0] : memref<8x16xf32, #tpu.memory_space<vmem>>, vector<8x16xf32>
    %c0_1 = arith.constant 0 : index
    %c0_2 = arith.constant 0 : index
    %1 = vector.load %arg2[%c0_1, %c0_2] : memref<16x32xf32, #tpu.memory_space<vmem>>, vector<16x32xf32>
    %cst = arith.constant dense<0.000000e+00> : vector<8x32xf32>
    %2 = tpu.matmul %0, %1, %cst {dimension_numbers = #tpu.dot_dimension_numbers<[1], [0], [0], [1], [0, 0, 1, 1], [], []>} : vector<8x16xf32>, vector<16x32xf32>, vector<8x32xf32> -> vector<8x32xf32>
    %c0_3 = arith.constant 0 : index
    %c0_4 = arith.constant 0 : index
    %3 = vector.load %arg3[%c0_3, %c0_4] : memref<1x32xf32, #tpu.memory_space<vmem>>, vector<1x32xf32>
    %4 = vector.broadcast %3 : vector<1x32xf32> to vector<8x32xf32>
    %5 = arith.addf %2, %4 : vector<8x32xf32>
    %cst_5 = arith.constant 0.000000e+00 : f32
    %6 = vector.broadcast %cst_5 : f32 to vector<8x32xf32>
    %7 = arith.maximumf %5, %6 : vector<8x32xf32>
    %c0_6 = arith.constant 0 : index
    %c0_7 = arith.constant 0 : index
    %c0_8 = arith.constant 0 : index
    %8 = vector.load %arg4[%c0_6, %c0_7, %c0_8] : memref<2x32x32xf32, #tpu.memory_space<vmem>>, vector<1x32x32xf32>
    %9 = vector.shape_cast %8 : vector<1x32x32xf32> to vector<32x32xf32>
    %cst_9 = arith.constant dense<0.000000e+00> : vector<8x32xf32>
    %10 = tpu.matmul %7, %9, %cst_9 {dimension_numbers = #tpu.dot_dimension_numbers<[1], [0], [0], [1], [0, 0, 1, 1], [], []>} : vector<8x32xf32>, vector<32x32xf32>, vector<8x32xf32> -> vector<8x32xf32>
    %c0_10 = arith.constant 0 : index
    %c0_11 = arith.constant 0 : index
    %c0_12 = arith.constant 0 : index
    %11 = vector.load %arg5[%c0_10, %c0_11, %c0_12] : memref<2x1x32xf32, #tpu.memory_space<vmem>>, vector<1x1x32xf32>
    %12 = vector.shape_cast %11 : vector<1x1x32xf32> to vector<1x32xf32>
    %13 = vector.broadcast %12 : vector<1x32xf32> to vector<8x32xf32>
    %14 = arith.addf %10, %13 : vector<8x32xf32>
    %15 = math.tanh %14 : vector<8x32xf32>
    %c1 = arith.constant 1 : index
    %c0_13 = arith.constant 0 : index
    %c0_14 = arith.constant 0 : index
    %16 = vector.load %arg4[%c1, %c0_13, %c0_14] : memref<2x32x32xf32, #tpu.memory_space<vmem>>, vector<1x32x32xf32>
    %17 = vector.shape_cast %16 : vector<1x32x32xf32> to vector<32x32xf32>
    %cst_15 = arith.constant dense<0.000000e+00> : vector<8x32xf32>
    %18 = tpu.matmul %15, %17, %cst_15 {dimension_numbers = #tpu.dot_dimension_numbers<[1], [0], [0], [1], [0, 0, 1, 1], [], []>} : vector<8x32xf32>, vector<32x32xf32>, vector<8x32xf32> -> vector<8x32xf32>
    %c1_16 = arith.constant 1 : index
    %c0_17 = arith.constant 0 : index
    %c0_18 = arith.constant 0 : index
    %19 = vector.load %arg5[%c1_16, %c0_17, %c0_18] : memref<2x1x32xf32, #tpu.memory_space<vmem>>, vector<1x1x32xf32>
    %20 = vector.shape_cast %19 : vector<1x1x32xf32> to vector<1x32xf32>
    %21 = vector.broadcast %20 : vector<1x32xf32> to vector<8x32xf32>
    %22 = arith.addf %18, %21 : vector<8x32xf32>
    %23 = math.tanh %22 : vector<8x32xf32>
    %c0_19 = arith.constant 0 : index
    %c0_20 = arith.constant 0 : index
    %24 = vector.load %arg6[%c0_19, %c0_20] : memref<32x4xf32, #tpu.memory_space<vmem>>, vector<32x4xf32>
    %cst_21 = arith.constant dense<0.000000e+00> : vector<8x4xf32>
    %25 = tpu.matmul %23, %24, %cst_21 {dimension_numbers = #tpu.dot_dimension_numbers<[1], [0], [0], [1], [0, 0, 1, 1], [], []>} : vector<8x32xf32>, vector<32x4xf32>, vector<8x4xf32> -> vector<8x4xf32>
    %c0_22 = arith.constant 0 : index
    %c0_23 = arith.constant 0 : index
    %26 = vector.load %arg7[%c0_22, %c0_23] : memref<1x4xf32, #tpu.memory_space<vmem>>, vector<1x4xf32>
    %27 = vector.broadcast %26 : vector<1x4xf32> to vector<8x4xf32>
    %28 = arith.addf %25, %27 : vector<8x4xf32>
    %c0_24 = arith.constant 0 : index
    %c0_25 = arith.constant 0 : index
    %29 = vector.load %arg8[%c0_24, %c0_25] : memref<8x4xf32, #tpu.memory_space<vmem>>, vector<8x4xf32>
    tpu.vector_store %arg8[%c0_24, %c0_25], %28 {strides = array<i32>} : memref<8x4xf32, #tpu.memory_space<vmem>>, vector<8x4xf32>,
    return
  }
  func.func @transform_0(%arg0: i32) -> (i32, i32) {
    %c0_i32 = arith.constant 0 : i32
    %c0_i32_0 = arith.constant 0 : i32
    return %arg0, %c0_i32 : i32, i32
  }
  func.func @transform_1(%arg0: i32) -> (i32, i32) {
    %c0_i32 = arith.constant 0 : i32
    %c0_i32_0 = arith.constant 0 : i32
    %c0_i32_1 = arith.constant 0 : i32
    return %c0_i32, %c0_i32_0 : i32, i32
  }
  func.func @transform_2(%arg0: i32) -> (i32, i32) {
    %c0_i32 = arith.constant 0 : i32
    %c0_i32_0 = arith.constant 0 : i32
    %c0_i32_1 = arith.constant 0 : i32
    return %c0_i32, %c0_i32_0 : i32, i32
  }
  func.func @transform_3(%arg0: i32) -> (i32, i32, i32) {
    %c0_i32 = arith.constant 0 : i32
    %c0_i32_0 = arith.constant 0 : i32
    %c0_i32_1 = arith.constant 0 : i32
    %c0_i32_2 = arith.constant 0 : i32
    return %c0_i32, %c0_i32_0, %c0_i32_1 : i32, i32, i32
  }
  func.func @transform_4(%arg0: i32) -> (i32, i32, i32) {
    %c0_i32 = arith.constant 0 : i32
    %c0_i32_0 = arith.constant 0 : i32
    %c0_i32_1 = arith.constant 0 : i32
    %c0_i32_2 = arith.constant 0 : i32
    return %c0_i32, %c0_i32_0, %c0_i32_1 : i32, i32, i32
  }
  func.func @transform_5(%arg0: i32) -> (i32, i32) {
    %c0_i32 = arith.constant 0 : i32
    %c0_i32_0 = arith.constant 0 : i32
    %c0_i32_1 = arith.constant 0 : i32
    return %c0_i32, %c0_i32_0 : i32, i32
  }
  func.func @transform_6(%arg0: i32) -> (i32, i32) {
    %c0_i32 = arith.constant 0 : i32
    %c0_i32_0 = arith.constant 0 : i32
    %c0_i32_1 = arith.constant 0 : i32
    return %c0_i32, %c0_i32_0 : i32, i32
  }
  func.func @transform_7(%arg0: i32) -> (i32, i32) {
    %c0_i32 = arith.constant 0 : i32
    %c0_i32_0 = arith.constant 0 : i32
    return %arg0, %c0_i32 : i32, i32
  }
}

</mosaic_0001>

<llo_original>
// kernel: tpu_custom_call.1
$region0: #{tpu_custom_call.1}
  #allocation0 [shape = 'u32[]', space=smem, size = 0x4, offset = 0x4, fixed_abs, tag = 'smem constant byte address 0x4 - core index']
  #allocation1 [shape = 'u32[72,128]{1,0:T(1,128)}', space=vmem, size = 0x9000, scoped, tag = 'internal scratch']
  %s0 = inlined_call_operand.vmem [shape: f32[8,16], index: 0, kind: input, shape index: {}]
  %s1 = inlined_call_operand.vmem [shape: f32[16,32], index: 1, kind: input, shape index: {}]
  %s2 = inlined_call_operand.vmem [shape: f32[1,32], index: 2, kind: input, shape index: {}]
  %s3 = inlined_call_operand.hbm [shape: f32[2,32,32], index: 3, kind: input, shape index: {}]
  %s4 = inlined_call_operand.vmem [shape: f32[2,1,32], index: 4, kind: input, shape index: {}]
  %s5 = inlined_call_operand.vmem [shape: f32[32,4], index: 5, kind: input, shape index: {}]
  %s6 = inlined_call_operand.vmem [shape: f32[1,4], index: 6, kind: input, shape index: {}]
  %s7 = inlined_call_operand.vmem [shape: f32[8,4], index: 7, kind: output, shape index: {}]
  %s8 = sld [smem:[#allocation0]]
  $region42: #{tpu_custom_call.1} parent=0
    _
  %s10 = ssub.s32 1, %s8
  %s11 = scalar_select 0, %s10, %s8
  $region1: #{tpu_custom_call.1} parent=0
    #allocation2 [shape = 'u8[32768]{0}', space=vmem, size = 0x8000, scoped, tag = 'input window, operand 3, single buffered']
    #allocation3 [shape = 's32[1]{0}', space=sflag, size = 0x4, scoped, tag = 'scoped memory for tpu_custom_call.1']
    %12 = vsyncpa [#allocation3], 0
    // Predicated region
    $region2: #{tpu_custom_call.1} parent=1 // pred_check
      _
    $region3: #{tpu_custom_call.1} parent=1 // pred_check_branch
      %14 = sbr.rel (0) target = $region5
    $region4: #{tpu_custom_call.1} parent=1 // pred_region
      _
    $region5: #{tpu_custom_call.1} parent=1 // pred_fallthru
      _
    // Predicated region
    $region6: #{tpu_custom_call.1} parent=1 // pred_check
      _
    $region7: #{tpu_custom_call.1} parent=1 // pred_check_branch
      %16 = sbr.rel (0) target = $region9
    $region8: #{tpu_custom_call.1} parent=1 // pred_region
      _
    $region9: #{tpu_custom_call.1} parent=1 // pred_fallthru
      _
    // Predicated region
    $region10: #{tpu_custom_call.1} parent=1 // pred_check
      _
    $region11: #{tpu_custom_call.1} parent=1 // pred_check_branch
      %18 = sbr.rel (0) target = $region13
    $region12: #{tpu_custom_call.1} parent=1 // pred_region
      _
    $region13: #{tpu_custom_call.1} parent=1 // pred_fallthru
      _
    // Predicated region
    $region14: #{tpu_custom_call.1} parent=1 // pred_check
      _
    $region15: #{tpu_custom_call.1} parent=1 // pred_check_branch
      %20 = sbr.rel (0) target = $region17
    $region16: #{tpu_custom_call.1} parent=1 // pred_region
      %22 = vsyncadd [#allocation3], 0
      %s23 = sshll.u32 %s3, 4
      %s24 = int_to_ptr.hbm [resolvable:$true] %s23
      %s25 = sshll.u32 [#allocation2], 4
      %s26 = int_to_ptr.vmem [resolvable:$true] %s25
      %31 = dma.hbm_to_vmem [thread:$0]  %s24, 1024, %s26, [#allocation3], 128, 128, 8
    $region17: #{tpu_custom_call.1} parent=1 // pred_fallthru
      _
    // Predicated region
    $region18: #{tpu_custom_call.1} parent=1 // pred_check
      _
    $region19: #{tpu_custom_call.1} parent=1 // pred_check_branch
      %33 = sbr.rel (0) target = $region21
    $region20: #{tpu_custom_call.1} parent=1 // pred_region
      _
    $region21: #{tpu_custom_call.1} parent=1 // pred_fallthru
      _
    // Predicated region
    $region22: #{tpu_custom_call.1} parent=1 // pred_check
      _
    $region23: #{tpu_custom_call.1} parent=1 // pred_check_branch
      %35 = sbr.rel (0) target = $region25
    $region24: #{tpu_custom_call.1} parent=1 // pred_region
      _
    $region25: #{tpu_custom_call.1} parent=1 // pred_fallthru
      _
    // Predicated region
    $region26: #{tpu_custom_call.1} parent=1 // pred_check
      _
    $region27: #{tpu_custom_call.1} parent=1 // pred_check_branch
      %37 = sbr.rel (0) target = $region29
    $region28: #{tpu_custom_call.1} parent=1 // pred_region
      _
    $region29: #{tpu_custom_call.1} parent=1 // pred_fallthru
      _
    // Predicated region
    $region30: #{tpu_custom_call.1} parent=1 // pred_check
      _
    $region31: #{tpu_custom_call.1} parent=1 // pred_check_branch
      %39 = sbr.rel (0) target = $region33
    $region32: #{tpu_custom_call.1} parent=1 // pred_region
      %41 = dma.done [#allocation3], 1024
    $region33: #{tpu_custom_call.1} parent=1 // pred_fallthru
      _
    %v42 = vld [vmem:[%s0] sm:$0xff]
    %v43 = vld [vmem:[%s1] sm:$0xff]
    %v44 = vld [vmem:[%s1 + $0x8] sm:$0xff]
    %v45 = vld [vmem:[%s2] sm:$0x1]
    %v47 = vperm.slane %v45, 0
    %vm49 = vcmask 130048
    %v51 = vsel %vm49, %v42, 0
    %53 = vmatpush.msra.mxu0 0.0
    %54 = vmatpush.msra.mxu0 0.0
    %55 = vmatpush.msra.mxu0 0.0
    %56 = vmatpush.msra.mxu0 0.0
    %57 = vmatpush.msra.mxu0 0.0
    %58 = vmatpush.msra.mxu0 0.0
    %59 = vmatpush.msra.mxu0 0.0
    %60 = vmatpush.msra.mxu0 0.0
    %61 = vmatpush.msra.mxu0 0.0
    %62 = vmatpush.msra.mxu0 0.0
    %63 = vmatpush.msra.mxu0 0.0
    %64 = vmatpush.msra.mxu0 0.0
    %65 = vmatpush.msra.mxu0 0.0
    %66 = vmatpush.msra.mxu0 0.0
    %67 = vmatpush.msra.mxu0 %v44
    %68 = vmatpush.msra.mxu0 %v43
    %69 = vmatmul.f32.gmra.mxu0 %v51
    %v70 = vpop.f32.mrf.mxu0
    %v71 = vadd.f32 %v47, %v70
    %72 = vdwg.mxu0
    %v73 = vmax.f32 %v71, 0.0
    %v74 = vld [vmem:[#allocation2] sm:$0xff]
    %v75 = vld [vmem:[#allocation2 + $0x8] sm:$0xff]
    %v76 = vld [vmem:[#allocation2 + $0x10] sm:$0xff]
    %v77 = vld [vmem:[#allocation2 + $0x18] sm:$0xff]
    %v78 = vld [vmem:[%s4] sm:$0x1]
    %v80 = vperm.slane %v78, 0
    %vm82 = vcmask 261120
    %v84 = vsel %vm82, %v73, 0
    %86 = vmatpush.msra.mxu0 0.0
    %87 = vmatpush.msra.mxu0 0.0
    %88 = vmatpush.msra.mxu0 0.0
    %89 = vmatpush.msra.mxu0 0.0
    %90 = vmatpush.msra.mxu0 0.0
    %91 = vmatpush.msra.mxu0 0.0
    %92 = vmatpush.msra.mxu0 0.0
    %93 = vmatpush.msra.mxu0 0.0
    %94 = vmatpush.msra.mxu0 0.0
    %95 = vmatpush.msra.mxu0 0.0
    %96 = vmatpush.msra.mxu0 0.0
    %97 = vmatpush.msra.mxu0 0.0
    %98 = vmatpush.msra.mxu0 %v77
    %99 = vmatpush.msra.mxu0 %v76
    %100 = vmatpush.msra.mxu0 %v75
    %101 = vmatpush.msra.mxu0 %v74
    %102 = vmatmul.f32.gmra.mxu0 %v84
    %v103 = vpop.f32.mrf.mxu0
    %v104 = vadd.f32 %v80, %v103
    %105 = vdwg.mxu0
    %v106 = vtanh.pop %v104
    %s107 = scalar_lea.vmem [#allocation2], 32
    %v108 = vld [vmem:[%s107] sm:$0xff]
    %v109 = vld [vmem:[%s107 + $0x8] sm:$0xff]
    %v110 = vld [vmem:[%s107 + $0x10] sm:$0xff]
    %v111 = vld [vmem:[%s107 + $0x18] sm:$0xff]
    %s112 = scalar_lea.vmem %s4, 1
    %v113 = vld [vmem:[%s112] sm:$0x1]
    %v115 = vperm.slane %v113, 0
    %v118 = vsel %vm82, %v106, 0
    %120 = vmatpush.msra.mxu0 0.0
    %121 = vmatpush.msra.mxu0 0.0
    %122 = vmatpush.msra.mxu0 0.0
    %123 = vmatpush.msra.mxu0 0.0
    %124 = vmatpush.msra.mxu0 0.0
    %125 = vmatpush.msra.mxu0 0.0
    %126 = vmatpush.msra.mxu0 0.0
    %127 = vmatpush.msra.mxu0 0.0
    %128 = vmatpush.msra.mxu0 0.0
    %129 = vmatpush.msra.mxu0 0.0
    %130 = vmatpush.msra.mxu0 0.0
    %131 = vmatpush.msra.mxu0 0.0
    %132 = vmatpush.msra.mxu0 %v111
    %133 = vmatpush.msra.mxu0 %v110
    %134 = vmatpush.msra.mxu0 %v109
    %135 = vmatpush.msra.mxu0 %v108
    %136 = vmatmul.f32.gmra.mxu0 %v118
    %v137 = vpop.f32.mrf.mxu0
    %v138 = vadd.f32 %v115, %v137
    %139 = vdwg.mxu0
    %v140 = vtanh.pop %v138
    %v141 = vld [vmem:[%s5] sm:$0xff]
    %v142 = vld [vmem:[%s5 + $0x8] sm:$0xff]
    %v143 = vld [vmem:[%s5 + $0x10] sm:$0xff]
    %v144 = vld [vmem:[%s5 + $0x18] sm:$0xff]
    %v145 = vld [vmem:[%s6] sm:$0x1]
    %v147 = vperm.slane %v145, 0
    %v150 = vsel %vm82, %v140, 0
    %152 = vmatpush.msra.mxu0 0.0
    %153 = vmatpush.msra.mxu0 0.0
    %154 = vmatpush.msra.mxu0 0.0
    %155 = vmatpush.msra.mxu0 0.0
    %156 = vmatpush.msra.mxu0 0.0
    %157 = vmatpush.msra.mxu0 0.0
    %158 = vmatpush.msra.mxu0 0.0
    %159 = vmatpush.msra.mxu0 0.0
    %160 = vmatpush.msra.mxu0 0.0
    %161 = vmatpush.msra.mxu0 0.0
    %162 = vmatpush.msra.mxu0 0.0
    %163 = vmatpush.msra.mxu0 0.0
    %164 = vmatpush.msra.mxu0 %v144
    %165 = vmatpush.msra.mxu0 %v143
    %166 = vmatpush.msra.mxu0 %v142
    %167 = vmatpush.msra.mxu0 %v141
    %168 = vmatmul.f32.gmra.mxu0 %v150
    %v169 = vpop.f32.mrf.mxu0
    %v170 = vadd.f32 %v147, %v169
    %171 = vdwg.mxu0
    %vm172 = vcmask 31744
    %173 = vst.msk [vmem:[%s7] sm:$0xff] %vm172, %v170
    // Predicated region
    $region34: #{tpu_custom_call.1} parent=1 // pred_check
      _
    $region35: #{tpu_custom_call.1} parent=1 // pred_check_branch
      %175 = sbr.rel (0) target = $region37
    $region36: #{tpu_custom_call.1} parent=1 // pred_region
      _
    $region37: #{tpu_custom_call.1} parent=1 // pred_fallthru
      _
    // Predicated region
    $region38: #{tpu_custom_call.1} parent=1 // pred_check
      _
    $region39: #{tpu_custom_call.1} parent=1 // pred_check_branch
      %177 = sbr.rel (0) target = $region41
    $region40: #{tpu_custom_call.1} parent=1 // pred_region
      _
    $region41: #{tpu_custom_call.1} parent=1 // pred_fallthru
      _
    %178 = vsyncpa [#allocation3], 1

</llo_original>
